<compile_context>
chip_gen: v7x
topology: tpu7x:2x2x1
jax: 0.10.0
libtpu: 0.0.40
codegen_flags: <defaults>
</compile_context>

<pallas_src>
import functools

import jax
import jax.numpy as jnp
from jax.experimental import pallas as pl
from jax.experimental.pallas import tpu as pltpu


# ----------------------------------------------------------------------------
# Kernel 1: matmul + per-output-channel scale/bias (+ optional ReLU) epilogue.
# K and N are single full blocks; only M is tiled.  Used for conv1 (via a
# small bf16 im2col) and for the classifier FC layers.
# ----------------------------------------------------------------------------

def _mm_epilogue_kernel(x_ref, w_ref, s_ref, b_ref, o_ref, *, relu):
    acc = jnp.dot(x_ref[...], w_ref[...], preferred_element_type=jnp.float32)
    y = acc * s_ref[...] + b_ref[...]
    if relu:
        y = jnp.maximum(y, 0.0)
    o_ref[...] = y.astype(o_ref.dtype)


def fused_matmul(x, w, scale, bias, *, relu, tm, out_dtype=jnp.float32):
    m, k = x.shape
    k2, n = w.shape
    assert k == k2 and m % tm == 0
    s2 = scale.reshape(1, n).astype(jnp.float32)
    b2 = bias.reshape(1, n).astype(jnp.float32)
    return pl.pallas_call(
        functools.partial(_mm_epilogue_kernel, relu=relu),
        out_shape=jax.ShapeDtypeStruct((m, n), out_dtype),
        grid_spec=pltpu.PrefetchScalarGridSpec(
            num_scalar_prefetch=0,
            grid=(m // tm,),
            in_specs=[
                pl.BlockSpec((tm, k), lambda i: (i, 0)),
                pl.BlockSpec((k, n), lambda i: (0, 0)),
                pl.BlockSpec((1, n), lambda i: (0, 0)),
                pl.BlockSpec((1, n), lambda i: (0, 0)),
            ],
            out_specs=pl.BlockSpec((tm, n), lambda i: (i, 0)),
        ),
        compiler_params=pltpu.CompilerParams(
            dimension_semantics=("parallel",)),
    )(x, w, s2, b2)


def _pick_tm(m, cap=1536):
    for c in range(min(cap, m), 0, -1):
        if c % 8 == 0 and m % c == 0:
            return c
    return m


# ----------------------------------------------------------------------------
# Kernel 2: fused stride-1 Conv2d + BatchNorm(eval) + ReLU ("row conv").
# One output row (for all batch images) per grid step.  The k needed input
# rows are delivered by k single-row BlockSpecs; (kh, kw) taps are accumulated
# in-kernel with MXU matmuls into an fp32 accumulator.
# ----------------------------------------------------------------------------

def _conv_row_kernel(*refs, k, nb, wo):
    x_rows = refs[:k]                                     # k single-row views
    w_ref, s_ref, b_ref, o_ref = refs[k], refs[k + 1], refs[k + 2], refs[k + 3]
    cout = w_ref.shape[-1]
    s = s_ref[...]                                        # (1, Cout) f32
    b = b_ref[...]
    accs = [jnp.zeros((wo, cout), jnp.float32) for _ in range(nb)]
    for kh in range(k):
        for kw in range(k):
            rhs = w_ref[kh, kw]                           # (Cin, Cout) bf16
            for n in range(nb):
                lhs = x_rows[kh][n, 0, kw:kw + wo, :]     # (Wo, Cin) bf16
                accs[n] = accs[n] + jnp.dot(
                    lhs, rhs, preferred_element_type=jnp.float32)
    for n in range(nb):
        y = jnp.maximum(accs[n] * s + b, 0.0)
        o_ref[n, 0] = y.astype(o_ref.dtype)


def conv_bn_relu_rows(xpad, w, scale, bias, *, k, out_dtype=jnp.bfloat16):
    """`xpad` is NHWC, already zero-padded by k//2 on H and W (the preceding
    pool kernel writes that padding)."""
    nb, hp, wp, cin = xpad.shape
    cout = w.shape[-1]
    ho, wo = hp - (k - 1), wp - (k - 1)
    s2 = scale.reshape(1, cout).astype(jnp.float32)
    b2 = bias.reshape(1, cout).astype(jnp.float32)
    row_specs = [
        pl.BlockSpec((nb, 1, wp, cin), (lambda i, kh=kh: (0, i + kh, 0, 0)))
        for kh in range(k)
    ]
    return pl.pallas_call(
        functools.partial(_conv_row_kernel, k=k, nb=nb, wo=wo),
        out_shape=jax.ShapeDtypeStruct((nb, ho, wo, cout), out_dtype),
        grid_spec=pltpu.PrefetchScalarGridSpec(
            num_scalar_prefetch=0,
            grid=(ho,),
            in_specs=row_specs + [
                pl.BlockSpec((k, k, cin, cout), lambda i: (0, 0, 0, 0)),
                pl.BlockSpec((1, cout), lambda i: (0, 0)),
                pl.BlockSpec((1, cout), lambda i: (0, 0)),
            ],
            out_specs=pl.BlockSpec((nb, 1, wo, cout), lambda i: (0, i, 0, 0)),
        ),
        compiler_params=pltpu.CompilerParams(
            dimension_semantics=("parallel",)),
    )(*([xpad] * k), w, s2, b2)


# ----------------------------------------------------------------------------
# Kernel 3: MaxPool2d(kernel=2, stride in {1,2}, padding=1) fused with the
# zero-padding needed by the NEXT conv layer.  One pooled output row per grid
# step; the two needed input rows come via clamped single-row BlockSpecs and
# are masked in-kernel (-inf padding semantics).  Inputs are post-ReLU.
# ----------------------------------------------------------------------------

_NEG = -1e30  # masked-window sentinel (inputs are >= 0 after ReLU)


def _pool_s1_kernel(ya_ref, yb_ref, o_ref, *, h, po, npad):
    p = pl.program_id(0)
    pp = p - npad
    dt = ya_ref.dtype
    neg = jnp.array(_NEG, dt)
    a = jnp.where(pp - 1 >= 0, ya_ref[...], neg)          # row pp-1
    b = jnp.where(pp <= h - 1, yb_ref[...], neg)          # row pp
    rm = jnp.maximum(a, b)                                # (N, 1, W, C)
    negcol = jnp.full(rm.shape[:2] + (1, rm.shape[3]), _NEG, dt)
    pooled = jnp.maximum(jnp.concatenate([negcol, rm], axis=2),
                         jnp.concatenate([rm, negcol], axis=2))
    rowok = jnp.logical_and(pp >= 0, pp <= po - 1)
    pooled = jnp.where(rowok, pooled, jnp.zeros_like(pooled))
    if npad > 0:
        zc = jnp.zeros(pooled.shape[:2] + (npad, pooled.shape[3]), dt)
        pooled = jnp.concatenate([zc, pooled, zc], axis=2)
    o_ref[...] = pooled.astype(o_ref.dtype)


def _pool_s2_kernel(ye0_ref, ye1_ref, yo0_ref, yo1_ref, o_ref,
                    *, h, po, qo, qe, npad):
    p = pl.program_id(0)
    pp = p - npad
    dt = ye0_ref.dtype
    neg = jnp.array(_NEG, dt)
    m0 = (2 * pp - 1) >= 0
    m1 = (2 * pp) <= h - 1
    e = jnp.maximum(jnp.where(m0, ye0_ref[...], neg),
                    jnp.where(m1, ye1_ref[...], neg))     # even cols (N,1,Qe,C)
    o = jnp.maximum(jnp.where(m0, yo0_ref[...], neg),
                    jnp.where(m1, yo1_ref[...], neg))     # odd cols  (N,1,Qod,C)
    negcol = jnp.full(e.shape[:2] + (1, e.shape[3]), _NEG, dt)
    o_sh = jnp.concatenate([negcol, o], axis=2)           # col 2q-1 at index q
    e_p = e if qe == qo else jnp.concatenate([e, negcol], axis=2)
    pooled = jnp.maximum(o_sh, e_p)                       # (N, 1, Qo, C)
    rowok = jnp.logical_and(pp >= 0, pp <= po - 1)
    pooled = jnp.where(rowok, pooled, jnp.zeros_like(pooled))
    if npad > 0:
        zc = jnp.zeros(pooled.shape[:2] + (npad, pooled.shape[3]), dt)
        pooled = jnp.concatenate([zc, pooled, zc], axis=2)
    o_ref[...] = pooled.astype(o_ref.dtype)


def maxpool_pad(y, *, pool_stride, next_pad):
    """MaxPool2d(2, pool_stride, padding=1) on NHWC `y`; output is written
    already zero-padded by `next_pad` (the following conv's padding)."""
    nb, h, w, c = y.shape
    npad = next_pad
    if pool_stride == 1:
        po, qo = h + 1, w + 1
        kern = functools.partial(_pool_s1_kernel, h=h, po=po, npad=npad)

        def rm0(p):
            return (0, jnp.minimum(jnp.maximum(p - npad - 1, 0), h - 1), 0, 0)

        def rm1(p):
            return (0, jnp.minimum(jnp.maximum(p - npad, 0), h - 1), 0, 0)

        in_specs = [pl.BlockSpec((nb, 1, w, c), rm0),
                    pl.BlockSpec((nb, 1, w, c), rm1)]
        args = (y, y)
    else:
        po, qo = h // 2 + 1, w // 2 + 1
        ye = y[:, :, 0::2, :]
        yo = y[:, :, 1::2, :]
        qe, qod = ye.shape[2], yo.shape[2]
        kern = functools.partial(_pool_s2_kernel, h=h, po=po, qo=qo, qe=qe,
                                 npad=npad)

        def rm0(p):
            return (0, jnp.minimum(jnp.maximum(2 * (p - npad) - 1, 0), h - 1),
                    0, 0)

        def rm1(p):
            return (0, jnp.minimum(jnp.maximum(2 * (p - npad), 0), h - 1),
                    0, 0)

        in_specs = [pl.BlockSpec((nb, 1, qe, c), rm0),
                    pl.BlockSpec((nb, 1, qe, c), rm1),
                    pl.BlockSpec((nb, 1, qod, c), rm0),
                    pl.BlockSpec((nb, 1, qod, c), rm1)]
        args = (ye, ye, yo, yo)
    return pl.pallas_call(
        kern,
        out_shape=jax.ShapeDtypeStruct(
            (nb, po + 2 * npad, qo + 2 * npad, c), y.dtype),
        grid_spec=pltpu.PrefetchScalarGridSpec(
            num_scalar_prefetch=0,
            grid=(po + 2 * npad,),
            in_specs=in_specs,
            out_specs=pl.BlockSpec((nb, 1, qo + 2 * npad, c),
                                   lambda p: (0, p, 0, 0)),
        ),
        compiler_params=pltpu.CompilerParams(
            dimension_semantics=("parallel",)),
    )(*args)


# ----------------------------------------------------------------------------
# Glue: layer-1 im2col, BN fold, parameters, forward pass.
# ----------------------------------------------------------------------------

def im2col(x, k, stride, pad):
    """x: (N,H,W,C) -> patches (N*Ho*Wo, k*k*C) ordered (kh, kw, cin)."""
    n, h, w, c = x.shape
    ho = (h + 2 * pad - k) // stride + 1
    wo = (w + 2 * pad - k) // stride + 1
    xp = jnp.pad(x, ((0, 0), (pad, pad), (pad, pad), (0, 0)))
    cols = [xp[:, kh:kh + stride * (ho - 1) + 1:stride,
               kw:kw + stride * (wo - 1) + 1:stride, :]
            for kh in range(k) for kw in range(k)]
    patches = jnp.concatenate(cols, axis=-1)
    return patches.reshape(n * ho * wo, k * k * c), ho, wo


def bn_fold(p, eps=1e-5):
    s = p["gamma"] / jnp.sqrt(p["var"] + eps)
    b = p["beta"] + (p["b"] - p["mean"]) * s
    return s, b


CONV_CFG = [  # (cin, cout, kernel, conv_stride, pool_stride)
    (3, 48, 5, 2, 2),
    (48, 64, 5, 1, 1),
    (64, 128, 5, 1, 2),
    (128, 160, 5, 1, 1),
    (160, 192, 5, 1, 2),
    (192, 192, 5, 1, 1),
    (192, 192, 5, 1, 2),
    (192, 192, 5, 1, 1),
    (192, 192, 3, 1, 2),
    (192, 192, 3, 1, 1),
]
POOL_NEXT_PAD = [CONV_CFG[i + 1][2] // 2 for i in range(len(CONV_CFG) - 1)] + [0]
FC_CFG = [(23232, 100), (100, 100), (100, 4)]


def init_params(key):
    params = {"conv": [], "fc": []}
    for (cin, cout, k, _, _) in CONV_CFG:
        key, k1, k2, k3, k4, k5, k6 = jax.random.split(key, 7)
        params["conv"].append(dict(
            w=jax.random.normal(k1, (k, k, cin, cout), jnp.float32)
              * jnp.sqrt(2.0 / (k * k * cin)),
            b=jax.random.normal(k2, (cout,), jnp.float32) * 0.01,
            gamma=jax.random.uniform(k3, (cout,), jnp.float32, 0.5, 1.5),
            beta=jax.random.normal(k4, (cout,), jnp.float32) * 0.1,
            mean=jax.random.normal(k5, (cout,), jnp.float32) * 0.1,
            var=jax.random.uniform(k6, (cout,), jnp.float32, 0.5, 1.5),
        ))
    for (fin, fout) in FC_CFG:
        key, k1, k2 = jax.random.split(key, 3)
        params["fc"].append(dict(
            w=jax.random.normal(k1, (fin, fout), jnp.float32) * jnp.sqrt(1.0 / fin),
            b=jax.random.normal(k2, (fout,), jnp.float32) * 0.01,
        ))
    return params


def wr2_forward(params, x_nchw):
    x = jnp.transpose(x_nchw, (0, 2, 3, 1)).astype(jnp.bfloat16)   # NHWC bf16
    n = x.shape[0]

    # layer 1: stride-2 conv via small bf16 im2col + fused Pallas matmul.
    cin0, cout0, k0, cs0, ps0 = CONV_CFG[0]
    p0 = params["conv"][0]
    s0, b0 = bn_fold(p0)
    cols, ho, wo = im2col(x, k0, stride=cs0, pad=k0 // 2)
    w0 = p0["w"].reshape(k0 * k0 * cin0, cout0).astype(jnp.bfloat16)
    y = fused_matmul(cols, w0, s0, b0, relu=True,
                     tm=_pick_tm(cols.shape[0]), out_dtype=jnp.bfloat16)
    y = y.reshape(n, ho, wo, cout0)
    x = maxpool_pad(y, pool_stride=ps0, next_pad=POOL_NEXT_PAD[0])

    # layers 2..10: fused row-conv kernels + fused pool/pad kernels.
    for li in range(1, len(CONV_CFG)):
        _, _, k, _, pstride = CONV_CFG[li]
        p = params["conv"][li]
        s, b = bn_fold(p)
        y = conv_bn_relu_rows(x, p["w"].astype(jnp.bfloat16), s, b, k=k)
        x = maxpool_pad(y, pool_stride=pstride, next_pad=POOL_NEXT_PAD[li])

    # classifier: PyTorch x.view(N, -1) on NCHW -> channel-major flatten.
    feat = jnp.transpose(x, (0, 3, 1, 2)).reshape(n, -1)
    out = feat
    for p in params["fc"]:
        w = p["w"].astype(jnp.bfloat16)
        ones = jnp.ones((w.shape[1],), jnp.float32)
        out = fused_matmul(out.astype(jnp.bfloat16), w, ones, p["b"],
                           relu=False, tm=n, out_dtype=jnp.float32)
    return out


# ----------------------------------------------------------------------------
# Main
# ----------------------------------------------------------------------------

if __name__ == "__main__":
    key = jax.random.PRNGKey(0)
    pkey, xkey = jax.random.split(key)
    params = init_params(pkey)

    # 480x480 input is what the classifier Linear(23232, 100) implies
    # (192 * 11 * 11 = 23232 after the 10 conv/pool stages).
    x = jax.random.normal(xkey, (2, 3, 480, 480), jnp.float32)

    # --- sanity check 1: fused matmul + scale/bias/ReLU epilogue ---
    a = jax.random.normal(jax.random.PRNGKey(1), (8, 19), jnp.float32)
    bmat = jax.random.normal(jax.random.PRNGKey(2), (19, 5), jnp.float32)
    s = jnp.linspace(0.5, 1.5, 5, dtype=jnp.float32)
    bb = jnp.linspace(-0.1, 0.1, 5, dtype=jnp.float32)
    got = fused_matmul(a, bmat, s, bb, relu=True, tm=8)
    want = jnp.maximum(a @ bmat * s + bb, 0.0)
    assert jnp.allclose(got, want, atol=1e-4, rtol=1e-4), "matmul kernel mismatch"

    # --- sanity check 2: row-conv kernel vs lax.conv reference ---
    kc, cin, cout, hh = 5, 16, 32, 13
    xs = jax.random.normal(jax.random.PRNGKey(3), (2, hh, hh, cin),
                           jnp.float32).astype(jnp.bfloat16)
    ws = (jax.random.normal(jax.random.PRNGKey(4), (kc, kc, cin, cout),
                            jnp.float32) * 0.1).astype(jnp.bfloat16)
    ss = jnp.linspace(0.8, 1.2, cout, dtype=jnp.float32)
    bs = jnp.linspace(-0.2, 0.2, cout, dtype=jnp.float32)
    xpad = jnp.pad(xs, ((0, 0), (2, 2), (2, 2), (0, 0)))
    got = conv_bn_relu_rows(xpad, ws, ss, bs, k=kc).astype(jnp.float32)
    ref = jax.lax.conv_general_dilated(
        xs.astype(jnp.float32), ws.astype(jnp.float32), (1, 1),
        ((2, 2), (2, 2)), dimension_numbers=("NHWC", "HWIO", "NHWC"))
    ref = jnp.maximum(ref * ss + bs, 0.0)
    assert jnp.allclose(got, ref, atol=5e-2, rtol=5e-2), "conv kernel mismatch"

    # --- sanity check 3: pool kernel vs reduce_window reference ---
    for (hh, ww) in ((9, 13), (10, 12)):
        for ps in (1, 2):
            yv = jax.nn.relu(jax.random.normal(
                jax.random.PRNGKey(5), (2, hh, ww, 24),
                jnp.float32)).astype(jnp.bfloat16)
            got = maxpool_pad(yv, pool_stride=ps, next_pad=1).astype(jnp.float32)
            ref = jax.lax.reduce_window(
                yv.astype(jnp.float32), -jnp.inf, jax.lax.max,
                (1, 2, 2, 1), (1, ps, ps, 1),
                ((0, 0), (1, 1), (1, 1), (0, 0)))
            assert jnp.allclose(got[:, 1:-1, 1:-1, :], ref, atol=1e-6), "pool mismatch"
            assert jnp.all(got[:, 0, :, :] == 0) and jnp.all(got[:, :, 0, :] == 0)

    out = jax.block_until_ready(jax.jit(wr2_forward)(params, x))
    assert out.shape == (2, 4)
    assert bool(jnp.all(jnp.isfinite(out)))
    print("KERNEL_OK")
</pallas_src>

<mosaic_0001>
module attributes {stable_mosaic.version = 11 : i64} {
  func.func @_mm_epilogue_kernel(%arg0: i32, %arg1: memref<8x19xf32, #tpu.memory_space<vmem>>, %arg2: memref<19x5xf32, #tpu.memory_space<vmem>>, %arg3: memref<1x5xf32, #tpu.memory_space<vmem>>, %arg4: memref<1x5xf32, #tpu.memory_space<vmem>>, %arg5: memref<8x5xf32, #tpu.memory_space<vmem>>) attributes {dimension_semantics = [#tpu.dimension_semantics<parallel>], iteration_bounds = array<i64: 1>, scalar_prefetch = 0 : i64, scratch_operands = 0 : i64, tpu.core_type = #tpu.core_type<tc>, window_params = [{transform_indices = @transform_0, window_bounds = array<i64: 8, 19>}, {pipeline_mode = #tpu.pipeline_mode<synchronous>, transform_indices = @transform_1, window_bounds = array<i64: 19, 5>}, {pipeline_mode = #tpu.pipeline_mode<synchronous>, transform_indices = @transform_2, window_bounds = array<i64: 1, 5>}, {pipeline_mode = #tpu.pipeline_mode<synchronous>, transform_indices = @transform_3, window_bounds = array<i64: 1, 5>}, {transform_indices = @transform_4, window_bounds = array<i64: 8, 5>}]} {
    %c0 = arith.constant 0 : index
    %c0_0 = arith.constant 0 : index
    %0 = vector.load %arg1[%c0, %c0_0] : memref<8x19xf32, #tpu.memory_space<vmem>>, vector<8x19xf32>
    %c0_1 = arith.constant 0 : index
    %c0_2 = arith.constant 0 : index
    %1 = vector.load %arg2[%c0_1, %c0_2] : memref<19x5xf32, #tpu.memory_space<vmem>>, vector<19x5xf32>
    %cst = arith.constant dense<0.000000e+00> : vector<8x5xf32>
    %2 = tpu.matmul %0, %1, %cst {dimension_numbers = #tpu.dot_dimension_numbers<[1], [0], [0], [1], [0, 0, 1, 1], [], []>} : vector<8x19xf32>, vector<19x5xf32>, vector<8x5xf32> -> vector<8x5xf32>
    %c0_3 = arith.constant 0 : index
    %c0_4 = arith.constant 0 : index
    %3 = vector.load %arg3[%c0_3, %c0_4] : memref<1x5xf32, #tpu.memory_space<vmem>>, vector<1x5xf32>
    %4 = vector.broadcast %3 : vector<1x5xf32> to vector<8x5xf32>
    %5 = arith.mulf %2, %4 : vector<8x5xf32>
    %c0_5 = arith.constant 0 : index
    %c0_6 = arith.constant 0 : index
    %6 = vector.load %arg4[%c0_5, %c0_6] : memref<1x5xf32, #tpu.memory_space<vmem>>, vector<1x5xf32>
    %7 = vector.broadcast %6 : vector<1x5xf32> to vector<8x5xf32>
    %8 = arith.addf %5, %7 : vector<8x5xf32>
    %cst_7 = arith.constant 0.000000e+00 : f32
    %9 = vector.broadcast %cst_7 : f32 to vector<8x5xf32>
    %10 = arith.maximumf %8, %9 : vector<8x5xf32>
    %c0_8 = arith.constant 0 : index
    %c0_9 = arith.constant 0 : index
    %11 = vector.load %arg5[%c0_8, %c0_9] : memref<8x5xf32, #tpu.memory_space<vmem>>, vector<8x5xf32>
    tpu.vector_store %arg5[%c0_8, %c0_9], %10 {strides = array<i32>} : memref<8x5xf32, #tpu.memory_space<vmem>>, vector<8x5xf32>,
    return
  }
  func.func @transform_0(%arg0: i32) -> (i32, i32) {
    %c0_i32 = arith.constant 0 : i32
    %c0_i32_0 = arith.constant 0 : i32
    return %arg0, %c0_i32 : i32, i32
  }
  func.func @transform_1(%arg0: i32) -> (i32, i32) {
    %c0_i32 = arith.constant 0 : i32
    %c0_i32_0 = arith.constant 0 : i32
    %c0_i32_1 = arith.constant 0 : i32
    return %c0_i32, %c0_i32_0 : i32, i32
  }
  func.func @transform_2(%arg0: i32) -> (i32, i32) {
    %c0_i32 = arith.constant 0 : i32
    %c0_i32_0 = arith.constant 0 : i32
    %c0_i32_1 = arith.constant 0 : i32
    return %c0_i32, %c0_i32_0 : i32, i32
  }
  func.func @transform_3(%arg0: i32) -> (i32, i32) {
    %c0_i32 = arith.constant 0 : i32
    %c0_i32_0 = arith.constant 0 : i32
    %c0_i32_1 = arith.constant 0 : i32
    return %c0_i32, %c0_i32_0 : i32, i32
  }
  func.func @transform_4(%arg0: i32) -> (i32, i32) {
    %c0_i32 = arith.constant 0 : i32
    %c0_i32_0 = arith.constant 0 : i32
    return %arg0, %c0_i32 : i32, i32
  }
}

</mosaic_0001>

<llo_original>
// kernel: tpu_custom_call.1
$region0: #{tpu_custom_call.1}
  #allocation0 [shape = 'u32[]', space=smem, size = 0x4, offset = 0x4, fixed_abs, tag = 'smem constant byte address 0x4 - core index']
  #allocation1 [shape = 'u32[144,128]{1,0:T(1,128)}', space=vmem, size = 0x12000, scoped, tag = 'internal scratch']
  %s0 = inlined_call_operand.vmem [shape: f32[8,19], index: 0, kind: input, shape index: {}]
  %s1 = inlined_call_operand.vmem [shape: f32[19,5], index: 1, kind: input, shape index: {}]
  %s2 = inlined_call_operand.vmem [shape: f32[1,5], index: 2, kind: input, shape index: {}]
  %s3 = inlined_call_operand.vmem [shape: f32[1,5], index: 3, kind: input, shape index: {}]
  %s4 = inlined_call_operand.hbm [shape: f32[8,5], index: 4, kind: output, shape index: {}]
  %s5 = sld [smem:[#allocation0]]
  $region26: #{tpu_custom_call.1} parent=0
    _
  %s7 = ssub.s32 1, %s5
  %s8 = scalar_select 0, %s7, %s5
  $region1: #{tpu_custom_call.1} parent=0
    #allocation2 [shape = 'u8[4096]{0}', space=vmem, size = 0x1000, scoped, tag = 'output window, operand 0, single buffered']
    #allocation3 [shape = 's32[1]{0}', space=sflag, size = 0x4, scoped, tag = 'scoped memory for tpu_custom_call.1']
    %9 = vsyncpa [#allocation3], 0
    // Predicated region
    $region2: #{tpu_custom_call.1} parent=1 // pred_check
      _
    $region3: #{tpu_custom_call.1} parent=1 // pred_check_branch
      %11 = sbr.rel (0) target = $region5
    $region4: #{tpu_custom_call.1} parent=1 // pred_region
      _
    $region5: #{tpu_custom_call.1} parent=1 // pred_fallthru
      _
    // Predicated region
    $region6: #{tpu_custom_call.1} parent=1 // pred_check
      _
    $region7: #{tpu_custom_call.1} parent=1 // pred_check_branch
      %13 = sbr.rel (0) target = $region9
    $region8: #{tpu_custom_call.1} parent=1 // pred_region
      _
    $region9: #{tpu_custom_call.1} parent=1 // pred_fallthru
      _
    // Predicated region
    $region10: #{tpu_custom_call.1} parent=1 // pred_check
      _
    $region11: #{tpu_custom_call.1} parent=1 // pred_check_branch
      %15 = sbr.rel (0) target = $region13
    $region12: #{tpu_custom_call.1} parent=1 // pred_region
      _
    $region13: #{tpu_custom_call.1} parent=1 // pred_fallthru
      _
    // Predicated region
    $region14: #{tpu_custom_call.1} parent=1 // pred_check
      _
    $region15: #{tpu_custom_call.1} parent=1 // pred_check_branch
      %17 = sbr.rel (0) target = $region17
    $region16: #{tpu_custom_call.1} parent=1 // pred_region
      _
    $region17: #{tpu_custom_call.1} parent=1 // pred_fallthru
      _
    %v18 = vld [vmem:[%s0] sm:$0xff]
    %v19 = vld [vmem:[%s1] sm:$0xff]
    %v20 = vld [vmem:[%s1 + $0x8] sm:$0xff]
    %v21 = vld [vmem:[%s1 + $0x10] sm:$0x7]
    %vm22 = vcmask 154624
    %v24 = vsel %vm22, %v18, 0
    %vm26 = vcmask 1042432
    %v28 = vsel %vm26, %v21, 0
    %30 = vmatprep.subr.mxu0 0.0
    %31 = vmatpush1.msra.mxu0 %v19
    %32 = vmatprep.subr.mxu0 0.0
    %33 = vmatpush1.msra.mxu0 %v20
    %34 = vmatprep.subr.mxu0 0.0
    %35 = vmatpush1.msra.mxu0 %v28
    %36 = vmatprep.subr.mxu0 0.0
    %37 = vmatpush1.msra.mxu0 0.0
    %38 = vmatprep.subr.mxu0 0.0
    %39 = vmatpush1.msra.mxu0 0.0
    %40 = vmatprep.subr.mxu0 0.0
    %41 = vmatpush1.msra.mxu0 0.0
    %42 = vmatprep.subr.mxu0 0.0
    %43 = vmatpush1.msra.mxu0 0.0
    %44 = vmatprep.subr.mxu0 0.0
    %45 = vmatpush1.msra.mxu0 0.0
    %46 = vmatprep.subr.mxu0 0.0
    %47 = vmatpush1.msra.mxu0 0.0
    %48 = vmatprep.subr.mxu0 0.0
    %49 = vmatpush1.msra.mxu0 0.0
    %50 = vmatprep.subr.mxu0 0.0
    %51 = vmatpush1.msra.mxu0 0.0
    %52 = vmatprep.subr.mxu0 0.0
    %53 = vmatpush1.msra.mxu0 0.0
    %54 = vmatprep.subr.mxu0 0.0
    %55 = vmatpush1.msra.mxu0 0.0
    %56 = vmatprep.subr.mxu0 0.0
    %57 = vmatpush1.msra.mxu0 0.0
    %58 = vmatprep.subr.mxu0 0.0
    %59 = vmatpush1.msra.mxu0 0.0
    %60 = vmatprep.subr.mxu0 0.0
    %61 = vmatpush1.msra.mxu0 0.0
    %62 = vmatprep.subr.mxu0 0.0
    %63 = vmatpush1.msra.mxu0 0.0
    %64 = vmatprep.subr.mxu0 0.0
    %65 = vmatpush1.msra.mxu0 0.0
    %66 = vmatprep.subr.mxu0 0.0
    %67 = vmatpush1.msra.mxu0 0.0
    %68 = vmatprep.subr.mxu0 0.0
    %69 = vmatpush1.msra.mxu0 0.0
    %70 = vmatprep.subr.mxu0 0.0
    %71 = vmatpush1.msra.mxu0 0.0
    %72 = vmatprep.subr.mxu0 0.0
    %73 = vmatpush1.msra.mxu0 0.0
    %74 = vmatprep.subr.mxu0 0.0
    %75 = vmatpush1.msra.mxu0 0.0
    %76 = vmatprep.subr.mxu0 0.0
    %77 = vmatpush1.msra.mxu0 0.0
    %78 = vmatprep.subr.mxu0 0.0
    %79 = vmatpush1.msra.mxu0 0.0
    %80 = vmatprep.subr.mxu0 0.0
    %81 = vmatpush1.msra.mxu0 0.0
    %82 = vmatprep.subr.mxu0 0.0
    %83 = vmatpush1.msra.mxu0 0.0
    %84 = vmatprep.subr.mxu0 0.0
    %85 = vmatpush1.msra.mxu0 0.0
    %86 = vmatprep.subr.mxu0 0.0
    %87 = vmatpush1.msra.mxu0 0.0
    %88 = vmatprep.subr.mxu0 0.0
    %89 = vmatpush1.msra.mxu0 0.0
    %90 = vmatprep.subr.mxu0 0.0
    %91 = vmatpush1.msra.mxu0 0.0
    %92 = vmatprep.subr.mxu0 0.0
    %93 = vmatpush1.msra.mxu0 0.0
    %94 = vmatprep.mubr.f32.mxu0 0.0
    %95 = vmatmul.mubr.f32.gmra.mrb[0].mxu0 %v24
    %v96 = vpop.f32.mrb[0].mxu0
    %v97 = vadd.f32 0.0, %v96
    %v98 = vpop.f32.mrb[0].mxu0
    %99 = vdwg.mxu0
    %v100 = vld [vmem:[%s2] sm:$0x1]
    %v102 = vlaneseq
    %v103 = vshrl.u32 %v102, 7
    %v104 = vsub.s32 0, %v103
    %v105 = vrot.slane %v100, %v104
    %v107 = vmul.f32 %v97, %v105
    %v108 = vld [vmem:[%s3] sm:$0x1]
    %v110 = vlaneseq
    %v111 = vshrl.u32 %v110, 7
    %v112 = vsub.s32 0, %v111
    %v113 = vrot.slane %v108, %v112
    %v115 = vadd.f32 %v107, %v113
    %v116 = vmax.f32 %v115, 0.0
    %vm117 = vcmask 39936
    %118 = vst.msk [vmem:[#allocation2] sm:$0xff] %vm117, %v116
    // Predicated region
    $region18: #{tpu_custom_call.1} parent=1 // pred_check
      _
    $region19: #{tpu_custom_call.1} parent=1 // pred_check_branch
      %120 = sbr.rel (0) target = $region21
    $region20: #{tpu_custom_call.1} parent=1 // pred_region
      %s122 = ssub.s32 128, 128
      %123 = vsyncadd [#allocation3], %s122
      %s125 = sshll.u32 [#allocation2], 4
      %s126 = int_to_ptr.vmem [resolvable:$true] %s125
      %128 = dma.vmem_to_hbm [thread:$0]  %s126, 128, %s4, [#allocation3]
    $region21: #{tpu_custom_call.1} parent=1 // pred_fallthru
      _
    // Predicated region
    $region22: #{tpu_custom_call.1} parent=1 // pred_check
      _
    $region23: #{tpu_custom_call.1} parent=1 // pred_check_branch
      %130 = sbr.rel (0) target = $region25
    $region24: #{tpu_custom_call.1} parent=1 // pred_region
      %131 = dma.done [#allocation3], 128
    $region25: #{tpu_custom_call.1} parent=1 // pred_fallthru
      _
    %132 = vsyncpa [#allocation3], 1

</llo_original>
